<compile_context>
chip_gen: v6e
topology: v6e:2x2x1
jax: 0.10.0
libtpu: 0.0.40
codegen_flags: <defaults>
</compile_context>

<pallas_src>
import jax
import jax.numpy as jnp
from jax import lax
from jax.experimental import pallas as pl
from jax.experimental.pallas import tpu as pltpu


def _usable_vmem_bytes():
    """Per-TensorCore VMEM budget we allow (headroom left for the compiler)."""
    try:
        cap = int(pltpu.get_tpu_info().vmem_capacity_bytes)
    except Exception:
        cap = 64 << 20                      # conservative: v7x per-TC VMEM
    return (cap * 3) // 4                   # ~48 MiB on v7x, ~96 MiB on v5e/v6e


def _pick_fused_b_tile(B, C, T, itemsize, usable):
    """Largest batch tile whose fused footprint fits VMEM; 0 if infeasible."""
    slab_in = C * T * itemsize              # one x tile (native dtype)
    slab_f32 = C * T * 4                    # f32 working copy of the slab
    # double-buffered x-in + out tiles, plus f32 temporaries (conservative).
    per_b = 2 * slab_in + 2 * slab_in + 2 * slab_f32
    fixed = C * C * 4 + C * 4 + (1 << 20)   # w, bias, misc headroom
    if per_b + fixed > usable:
        return 0
    b_tile = min(B, (usable - fixed) // per_b)
    # Keep >= 2 grid steps when B allows it (pipelining + both TCs on v7x).
    if B >= 2:
        b_tile = min(b_tile, (B + 1) // 2)
    # Cap per-step slab so the pipeline granularity stays reasonable.
    b_tile = min(b_tile, max(1, (16 << 20) // max(1, slab_in)))
    return max(1, b_tile)


def _pick_t_tile(T, bytes_per_t, target_step_bytes=4 << 20):
    """Lane-dense T tile sized by a byte budget: multiple of 128, or full T."""
    if T <= 256:
        return T
    if T % 128 != 0 and T * bytes_per_t <= 2 * target_step_bytes:
        return T                            # full-extent last dim is always legal
    want = max(128, target_step_bytes // max(1, bytes_per_t))
    t = min(want, T)
    t = (t // 128) * 128
    return max(t, 128)


def fms_forward(x, w, b, *, fused=None, b_tile=None, t_tile=None):
    """FMS forward.

    x: (B, C, T) float  (NCW, as PyTorch Conv1d output)
    w: (C, C)    float  (nn.Linear weight, [out_features, in_features])
    b: (C,)      float  (nn.Linear bias)
    returns (B, C, T) with x.dtype
    """
    B, C, T = x.shape
    out_dtype = x.dtype
    usable = _usable_vmem_bytes()
    inv_T = 1.0 / float(T)
    w_f32 = w.astype(jnp.float32)
    bias2d = b.reshape(1, C).astype(jnp.float32)

    # ------------------ Fused single-pass path (1 read + 1 write) ------------
    use_fused = fused if fused is not None else (t_tile is None)
    fb = 0
    if use_fused:
        fb = _pick_fused_b_tile(B, C, T, x.dtype.itemsize, usable)
        if fb > 0 and b_tile is not None:
            fb = max(1, min(b_tile, B))
        elif fb == 0 and fused is True:
            fb = 1 if b_tile is None else max(1, min(b_tile, B))

    if fb > 0:
        num_b = pl.cdiv(B, fb)

        def _fused_kernel(x_ref, w_ref, bias_ref, o_ref):
            xt = x_ref[...].astype(jnp.float32)                    # (fb, C, T)
            pooled = jnp.sum(xt, axis=-1) * inv_T                  # (fb, C)
            y = lax.dot_general(                                   # pooled @ W.T
                pooled, w_ref[...],
                dimension_numbers=(((1,), (1,)), ((), ())),
                preferred_element_type=jnp.float32)
            s = jax.nn.sigmoid(y + bias_ref[...])[:, :, None]      # (fb, C, 1)
            o_ref[...] = ((xt + 1.0) * s).astype(o_ref.dtype)      # = x*s + s

        return pl.pallas_call(
            _fused_kernel,
            out_shape=jax.ShapeDtypeStruct((B, C, T), out_dtype),
            grid_spec=pltpu.PrefetchScalarGridSpec(
                num_scalar_prefetch=0,
                grid=(num_b,),
                in_specs=[
                    pl.BlockSpec((fb, C, T), lambda bi: (bi, 0, 0)),
                    pl.BlockSpec((C, C), lambda bi: (0, 0)),
                    pl.BlockSpec((1, C), lambda bi: (0, 0)),
                ],
                out_specs=pl.BlockSpec((fb, C, T), lambda bi: (bi, 0, 0)),
            ),
            compiler_params=pltpu.CompilerParams(
                dimension_semantics=("parallel",),
                vmem_limit_bytes=usable),
        )(x, w_f32, bias2d)

    # ------------------ Two-pass fallback (slab too big for VMEM) ------------
    bt = 1 if b_tile is None else max(1, min(b_tile, B))
    tt = _pick_t_tile(T, bt * C * x.dtype.itemsize) if t_tile is None \
        else min(t_tile, T)
    num_b = pl.cdiv(B, bt)
    num_t = pl.cdiv(T, tt)
    needs_mask = (T % tt) != 0

    # Pass 1: per-(b, C) sum over T, accumulated in the resident f32 output.
    def _reduce_kernel(x_ref, sum_ref):
        ti = pl.program_id(1)
        nt = pl.num_programs(1)

        @pl.when(ti == 0)
        def _():
            sum_ref[...] = jnp.zeros_like(sum_ref)

        def _add(mask_tail):
            xt = x_ref[...].astype(jnp.float32)                    # (bt, C, tt)
            if mask_tail:
                pos = ti * tt + lax.broadcasted_iota(jnp.int32, xt.shape, 2)
                xt = jnp.where(pos < T, xt, 0.0)
            sum_ref[...] += jnp.sum(xt, axis=-1, keepdims=True)

        if needs_mask:
            # Tail mask only on the last T tile; hot path stays unmasked.
            @pl.when(ti < nt - 1)
            def _():
                _add(False)

            @pl.when(ti == nt - 1)
            def _():
                _add(True)
        else:
            _add(False)

    sums = pl.pallas_call(
        _reduce_kernel,
        out_shape=jax.ShapeDtypeStruct((B, C, 1), jnp.float32),
        grid_spec=pltpu.PrefetchScalarGridSpec(
            num_scalar_prefetch=0,
            grid=(num_b, num_t),
            in_specs=[pl.BlockSpec((bt, C, tt), lambda bi, ti: (bi, 0, ti))],
            out_specs=pl.BlockSpec((bt, C, 1), lambda bi, ti: (bi, 0, 0)),
        ),
        compiler_params=pltpu.CompilerParams(
            dimension_semantics=("parallel", "arbitrary"),
            vmem_limit_bytes=usable),
    )(x)

    # Tiny (B, C) Linear + sigmoid once over the whole batch (outside Pallas).
    pooled = sums[:, :, 0] * inv_T
    s = jax.nn.sigmoid(pooled @ w_f32.T + bias2d)[:, :, None]      # (B, C, 1) f32

    # Pass 2: out = (x + 1) * s  (single broadcast of s), streaming T tiles.
    def _apply_kernel(x_ref, s_ref, o_ref):
        s_blk = s_ref[...]                                         # (bt, C, 1)
        o_ref[...] = ((x_ref[...] + 1.0) * s_blk).astype(o_ref.dtype)

    return pl.pallas_call(
        _apply_kernel,
        out_shape=jax.ShapeDtypeStruct((B, C, T), out_dtype),
        grid_spec=pltpu.PrefetchScalarGridSpec(
            num_scalar_prefetch=0,
            grid=(num_b, num_t),
            in_specs=[
                pl.BlockSpec((bt, C, tt), lambda bi, ti: (bi, 0, ti)),
                pl.BlockSpec((bt, C, 1), lambda bi, ti: (bi, 0, 0)),
            ],
            out_specs=pl.BlockSpec((bt, C, tt), lambda bi, ti: (bi, 0, ti)),
        ),
        compiler_params=pltpu.CompilerParams(
            dimension_semantics=("parallel", "parallel"),
            vmem_limit_bytes=usable),
    )(x, s)


def fms_reference(x, w, b):
    pooled = jnp.mean(x, axis=-1)                                  # (B, C)
    s = jax.nn.sigmoid(pooled @ w.T + b)[:, :, None]               # (B, C, 1)
    return x * s + s


if __name__ == "__main__":
    key = jax.random.PRNGKey(0)
    ks = jax.random.split(key, 9)

    def _mk(kx, kw, kb, B, C, T):
        x = jax.random.normal(kx, (B, C, T), dtype=jnp.float32)
        bound = 1.0 / float(C) ** 0.5
        w = jax.random.uniform(kw, (C, C), minval=-bound, maxval=bound,
                               dtype=jnp.float32)
        b = jax.random.uniform(kb, (C,), minval=-bound, maxval=bound,
                               dtype=jnp.float32)
        return x, w, b

    # ---- Test 1: small toy shape -> fused single-pass path ----
    x, w, b = _mk(ks[0], ks[1], ks[2], 2, 4, 16)
    out = fms_forward(x, w, b)
    jax.block_until_ready(out)
    assert out.shape == (2, 4, 16)
    assert jnp.allclose(out, fms_reference(x, w, b), atol=1e-5, rtol=1e-5)

    # ---- Test 2: forced two-pass path, multiple lane-dense T tiles ----
    x2, w2, b2 = _mk(ks[3], ks[4], ks[5], 2, 8, 384)
    out2 = fms_forward(x2, w2, b2, fused=False, t_tile=128)        # 3 T tiles
    jax.block_until_ready(out2)
    assert jnp.allclose(out2, fms_reference(x2, w2, b2), atol=1e-5, rtol=1e-5)

    # ---- Test 3: two-pass path with a ragged tail tile (T % t_tile != 0) ----
    x3, w3, b3 = _mk(ks[6], ks[7], ks[8], 2, 8, 200)
    out3 = fms_forward(x3, w3, b3, fused=False, t_tile=128)        # tail of 72
    jax.block_until_ready(out3)
    assert jnp.allclose(out3, fms_reference(x3, w3, b3), atol=1e-5, rtol=1e-5)

    print("KERNEL_OK")
</pallas_src>

<mosaic_0001>
module attributes {stable_mosaic.version = 11 : i64} {
  func.func @_fused_kernel(%arg0: i32, %arg1: memref<1x4x16xf32, #tpu.memory_space<vmem>>, %arg2: memref<4x4xf32, #tpu.memory_space<vmem>>, %arg3: memref<1x4xf32, #tpu.memory_space<vmem>>, %arg4: memref<1x4x16xf32, #tpu.memory_space<vmem>>) attributes {dimension_semantics = [#tpu.dimension_semantics<parallel>], iteration_bounds = array<i64: 2>, scalar_prefetch = 0 : i64, scratch_operands = 0 : i64, tpu.core_type = #tpu.core_type<tc>, window_params = [{transform_indices = @transform_0, window_bounds = array<i64: 1, 4, 16>}, {pipeline_mode = #tpu.pipeline_mode<synchronous>, transform_indices = @transform_1, window_bounds = array<i64: 4, 4>}, {pipeline_mode = #tpu.pipeline_mode<synchronous>, transform_indices = @transform_2, window_bounds = array<i64: 1, 4>}, {transform_indices = @transform_3, window_bounds = array<i64: 1, 4, 16>}]} {
    %c0 = arith.constant 0 : index
    %c0_0 = arith.constant 0 : index
    %c0_1 = arith.constant 0 : index
    %0 = vector.load %arg1[%c0, %c0_0, %c0_1] : memref<1x4x16xf32, #tpu.memory_space<vmem>>, vector<1x4x16xf32>
    %cst = arith.constant dense<0.000000e+00> : vector<1x4xf32>
    %1 = vector.multi_reduction <add>, %0, %cst [2] : vector<1x4x16xf32> to vector<1x4xf32>
    %cst_2 = arith.constant 6.250000e-02 : f32
    %2 = vector.broadcast %cst_2 : f32 to vector<1x4xf32>
    %3 = arith.mulf %1, %2 : vector<1x4xf32>
    %c0_3 = arith.constant 0 : index
    %c0_4 = arith.constant 0 : index
    %4 = vector.load %arg2[%c0_3, %c0_4] : memref<4x4xf32, #tpu.memory_space<vmem>>, vector<4x4xf32>
    %cst_5 = arith.constant dense<0.000000e+00> : vector<1x4xf32>
    %5 = tpu.matmul %3, %4, %cst_5 {dimension_numbers = #tpu.dot_dimension_numbers<[1], [1], [0], [0], [0, 0, 1, 0], [], []>} : vector<1x4xf32>, vector<4x4xf32>, vector<1x4xf32> -> vector<1x4xf32>
    %c0_6 = arith.constant 0 : index
    %c0_7 = arith.constant 0 : index
    %6 = vector.load %arg3[%c0_6, %c0_7] : memref<1x4xf32, #tpu.memory_space<vmem>>, vector<1x4xf32>
    %7 = arith.addf %5, %6 : vector<1x4xf32>
    %8 = arith.negf %7 : vector<1x4xf32>
    %9 = math.exp %8 : vector<1x4xf32>
    %cst_8 = arith.constant 1.000000e+00 : f32
    %10 = vector.broadcast %cst_8 : f32 to vector<1x4xf32>
    %11 = arith.addf %10, %9 : vector<1x4xf32>
    %12 = arith.divf %10, %11 : vector<1x4xf32>
    %13 = vector.shape_cast %12 : vector<1x4xf32> to vector<1x4x1xf32>
    %cst_9 = arith.constant 1.000000e+00 : f32
    %14 = vector.broadcast %cst_9 : f32 to vector<1x4x16xf32>
    %15 = arith.addf %0, %14 : vector<1x4x16xf32>
    %16 = vector.broadcast %13 : vector<1x4x1xf32> to vector<1x4x16xf32>
    %17 = arith.mulf %15, %16 : vector<1x4x16xf32>
    %c0_10 = arith.constant 0 : index
    %c0_11 = arith.constant 0 : index
    %c0_12 = arith.constant 0 : index
    %18 = vector.load %arg4[%c0_10, %c0_11, %c0_12] : memref<1x4x16xf32, #tpu.memory_space<vmem>>, vector<1x4x16xf32>
    tpu.vector_store %arg4[%c0_10, %c0_11, %c0_12], %17 {strides = array<i32>} : memref<1x4x16xf32, #tpu.memory_space<vmem>>, vector<1x4x16xf32>,
    return
  }
  func.func @transform_0(%arg0: i32) -> (i32, i32, i32) {
    %c0_i32 = arith.constant 0 : i32
    %c0_i32_0 = arith.constant 0 : i32
    %c0_i32_1 = arith.constant 0 : i32
    return %arg0, %c0_i32, %c0_i32_0 : i32, i32, i32
  }
  func.func @transform_1(%arg0: i32) -> (i32, i32) {
    %c0_i32 = arith.constant 0 : i32
    %c0_i32_0 = arith.constant 0 : i32
    %c0_i32_1 = arith.constant 0 : i32
    return %c0_i32, %c0_i32_0 : i32, i32
  }
  func.func @transform_2(%arg0: i32) -> (i32, i32) {
    %c0_i32 = arith.constant 0 : i32
    %c0_i32_0 = arith.constant 0 : i32
    %c0_i32_1 = arith.constant 0 : i32
    return %c0_i32, %c0_i32_0 : i32, i32
  }
  func.func @transform_3(%arg0: i32) -> (i32, i32, i32) {
    %c0_i32 = arith.constant 0 : i32
    %c0_i32_0 = arith.constant 0 : i32
    %c0_i32_1 = arith.constant 0 : i32
    return %arg0, %c0_i32, %c0_i32_0 : i32, i32, i32
  }
}

</mosaic_0001>

<llo_original>
// kernel: tpu_custom_call.1
$region0: #{tpu_custom_call.1}
  #allocation0 [shape = 'u32[]', space=smem, size = 0x4, offset = 0x4, fixed_abs, tag = 'smem constant byte address 0x4 - core index']
  #allocation1 [shape = 'u32[144,128]{1,0:T(1,128)}', space=vmem, size = 0x12000, scoped, tag = 'internal scratch']
  %s0 = inlined_call_operand.hbm [shape: f32[2,4,16], index: 0, kind: input, shape index: {}]
  %s1 = inlined_call_operand.hbm [shape: f32[4,4], index: 1, kind: input, shape index: {}]
  %s2 = inlined_call_operand.vmem [shape: f32[1,4], index: 2, kind: input, shape index: {}]
  %s3 = inlined_call_operand.hbm [shape: f32[2,4,16], index: 3, kind: output, shape index: {}]
  %s4 = sld [smem:[#allocation0]]
  $region53: #{tpu_custom_call.1} parent=0
    _
  %s6 = ssub.s32 1, %s4
  %s7 = scalar_select 0, %s6, %s4
  $region1: #{tpu_custom_call.1} parent=0
    #allocation2 [shape = 'u8[4096]{0}', space=vmem, size = 0x1000, scoped, tag = 'input window, operand 0']
    #allocation3 [shape = 's32[2]{0}', space=sflag, size = 0x8, scoped, tag = 'scoped memory for tpu_custom_call.1']
    #allocation4 [shape = 's32[2]{0}', space=sflag, size = 0x8, scoped, tag = 'scoped memory for tpu_custom_call.1']
    #allocation5 [shape = 'u8[2048]{0}', space=vmem, size = 0x800, scoped, tag = 'input window, operand 1, single buffered']
    #allocation6 [shape = 's32[1]{0}', space=sflag, size = 0x4, scoped, tag = 'scoped memory for tpu_custom_call.1']
    #allocation7 [shape = 'u8[4096]{0}', space=vmem, size = 0x1000, scoped, tag = 'output window, operand 0']
    %8 = vsyncpa [#allocation3], 0
    %s9 = scalar_lea.sflag [#allocation3], 1
    %10 = vsyncpa %s9, 0
    %11 = vsyncpa [#allocation6], 0
    %12 = vsyncpa [#allocation4], 0
    %s13 = scalar_lea.sflag [#allocation4], 1
    %14 = vsyncpa %s13, 0
    loop: start=0, step=1, limit=4
    $region2: #{tpu_custom_call.1} parent=1 // loop_pre_header
      _
    $region3: #{tpu_custom_call.1} parent=1 // loop_header
      %s16 = sphi 0, %s20
      %p17 = scmp.ge.s32.totalorder %s16, 4
      %s26 = sphi 0, %s28
      %s29 = sphi 0, %s26
      %s30 = sphi 0, %s29
      %s46 = sphi 0, %s30
      %s50 = sphi 0, %s50
      %s52 = sphi 0, %s50
      %s53 = sphi 0, %s52
      %s67 = sphi 0, %s53
      %s71 = sphi 0, %s71
      %s73 = sphi 0, %s71
      %s74 = sphi 0, %s73
      %s88 = sphi 0, %s74
      %s94 = sphi 0, %s96
      %s97 = sphi 0, %s94
      %s98 = sphi 0, %s97
      %s114 = sphi 0, %s98
    $region4: #{tpu_custom_call.1} parent=1 // loop_header_branch
      %19 = sbr.rel (%p17) target = $region8
    $region5: #{tpu_custom_call.1} parent=1 // loop_body
      %s21 = ssub.s32 %s16, 1
      %s22 = ssub.s32 %s16, 2
      %s23 = sadd.s32 %s16, 1
      %s24 = ssub.s32 %s16, %s23
      %p25 = scmp.eq.s32.totalorder %s24, 0
      %s27 = sadd.s32 %s26, 1
      %s28 = scalar_select %p25, %s26, %s27
      %p31 = pneg %p25
      %p32 = scmp.eq.s32.totalorder %s16, 1
      %p33 = por %p31, %p32
      %p34 = scmp.ne.s32.totalorder %s26, %s29
      %p35 = scmp.eq.s32.totalorder %s16, 0
      %p36 = por %p34, %p35
      %p37 = scmp.ne.s32.totalorder %s26, %s29
      %p38 = scmp.eq.s32.totalorder %s21, 1
      %p39 = por %p37, %p38
      %p40 = scmp.ne.s32.totalorder %s29, %s30
      %p41 = scmp.eq.s32.totalorder %s21, 0
      %p42 = por %p40, %p41
      %p43 = scmp.ne.s32.totalorder %s29, %s30
      %p44 = scmp.eq.s32.totalorder %s22, 1
      %p45 = por %p43, %p44
      %p47 = scmp.ne.s32.totalorder %s30, %s46
      %p48 = scmp.eq.s32.totalorder %s22, 0
      %p49 = por %p47, %p48
      %s51 = sadd.s32 %s50, 1
      %p54 = scmp.eq.s32.totalorder %s16, 1
      %p55 = scmp.ne.s32.totalorder %s50, %s52
      %p56 = scmp.eq.s32.totalorder %s16, 0
      %p57 = por %p55, %p56
      %p58 = scmp.ne.s32.totalorder %s50, %s52
      %p59 = scmp.eq.s32.totalorder %s21, 1
      %p60 = por %p58, %p59
      %p61 = scmp.ne.s32.totalorder %s52, %s53
      %p62 = scmp.eq.s32.totalorder %s21, 0
      %p63 = por %p61, %p62
      %p64 = scmp.ne.s32.totalorder %s52, %s53
      %p65 = scmp.eq.s32.totalorder %s22, 1
      %p66 = por %p64, %p65
      %p68 = scmp.ne.s32.totalorder %s53, %s67
      %p69 = scmp.eq.s32.totalorder %s22, 0
      %p70 = por %p68, %p69
      %s72 = sadd.s32 %s71, 1
      %p75 = scmp.eq.s32.totalorder %s16, 1
      %p76 = scmp.ne.s32.totalorder %s71, %s73
      %p77 = scmp.eq.s32.totalorder %s16, 0
      %p78 = por %p76, %p77
      %p79 = scmp.ne.s32.totalorder %s71, %s73
      %p80 = scmp.eq.s32.totalorder %s21, 1
      %p81 = por %p79, %p80
      %p82 = scmp.ne.s32.totalorder %s73, %s74
      %p83 = scmp.eq.s32.totalorder %s21, 0
      %p84 = por %p82, %p83
      %p85 = scmp.ne.s32.totalorder %s73, %s74
      %p86 = scmp.eq.s32.totalorder %s22, 1
      %p87 = por %p85, %p86
      %p89 = scmp.ne.s32.totalorder %s74, %s88
      %p90 = scmp.eq.s32.totalorder %s22, 0
      %p91 = por %p89, %p90
      %s92 = ssub.s32 %s16, %s23
      %p93 = scmp.eq.s32.totalorder %s92, 0
      %s95 = sadd.s32 %s94, 1
      %s96 = scalar_select %p93, %s94, %s95
      %p99 = pneg %p93
      %p100 = scmp.eq.s32.totalorder %s16, 1
      %p101 = por %p99, %p100
      %p102 = scmp.ne.s32.totalorder %s94, %s97
      %p103 = scmp.eq.s32.totalorder %s16, 0
      %p104 = por %p102, %p103
      %p105 = scmp.ne.s32.totalorder %s94, %s97
      %p106 = scmp.eq.s32.totalorder %s21, 1
      %p107 = por %p105, %p106
      %p108 = scmp.ne.s32.totalorder %s97, %s98
      %p109 = scmp.eq.s32.totalorder %s21, 0
      %p110 = por %p108, %p109
      %p111 = scmp.ne.s32.totalorder %s97, %s98
      %p112 = scmp.eq.s32.totalorder %s22, 1
      %p113 = por %p111, %p112
      %p115 = scmp.ne.s32.totalorder %s98, %s114
      %p116 = scmp.eq.s32.totalorder %s22, 0
      %p117 = por %p115, %p116
      %p118 = scmp.le.s32.totalorder 1, %s16
      %p119 = scmp.lt.s32.totalorder %s16, 3
      %p120 = pnand %p118, %p119
      %p121 = pneg %p120
      // Predicated region
      $region9: #{tpu_custom_call.1} parent=5 // pred_check
        _
      $region10: #{tpu_custom_call.1} parent=5 // pred_check_branch
        %123 = sbr.rel (%p120) target = $region12
      $region11: #{tpu_custom_call.1} parent=5 // pred_region
        %s124 = ssub.s32 %s16, 1
        // Predicated region
        $region13: #{tpu_custom_call.1} parent=11 // pred_check
          %p125 = pneg %p63
        $region14: #{tpu_custom_call.1} parent=11 // pred_check_branch
          %127 = sbr.rel (%p125) target = $region16
        $region15: #{tpu_custom_call.1} parent=11 // pred_region
          %s129 = ssub.s32 64, 64
          %130 = vsyncadd [#allocation6], %s129
          %s132 = sshll.u32 [#allocation5], 4
          %s133 = int_to_ptr.vmem [resolvable:$true] %s132
          %135 = dma.hbm_to_vmem [thread:$0]  %s1, 64, %s133, [#allocation6]
        $region16: #{tpu_custom_call.1} parent=11 // pred_fallthru
          _
        // Predicated region
        $region17: #{tpu_custom_call.1} parent=11 // pred_check
          %p136 = pneg %p84
        $region18: #{tpu_custom_call.1} parent=11 // pred_check_branch
          %138 = sbr.rel (%p136) target = $region20
        $region19: #{tpu_custom_call.1} parent=11 // pred_region
          _
        $region20: #{tpu_custom_call.1} parent=11 // pred_fallthru
          _
      $region12: #{tpu_custom_call.1} parent=5 // pred_fallthru
        _
      %p139 = scmp.lt.s32.totalorder %s16, 2
      // Predicated region
      $region21: #{tpu_custom_call.1} parent=5 // pred_check
        %p140 = pneg %p139
      $region22: #{tpu_custom_call.1} parent=5 // pred_check_branch
        %142 = sbr.rel (%p140) target = $region24
      $region23: #{tpu_custom_call.1} parent=5 // pred_region
        // Predicated region
        $region25: #{tpu_custom_call.1} parent=23 // pred_check
          %p143 = pneg %p36
        $region26: #{tpu_custom_call.1} parent=23 // pred_check_branch
          %145 = sbr.rel (%p143) target = $region28
        $region27: #{tpu_custom_call.1} parent=23 // pred_region
          %s146 = sand.u32 %s26, 1
          %s147 = scalar_lea.sflag [#allocation3], %s146
          %s148 = sand.u32 %s26, 1
          %s149 = smul.addr %s148, 4
          %s150 = scalar_lea.vmem [#allocation2], %s149
          %s152 = ssub.s32 64, 64
          %153 = vsyncadd %s147, %s152
          %s154 = smul.addr %s16, 64
          %s155 = scalar_lea.hbm %s0, %s154
          %s157 = sshll.u32 %s150, 4
          %s158 = int_to_ptr.vmem [resolvable:$true] %s157
          %160 = dma.hbm_to_vmem [thread:$0]  %s155, 64, %s158, %s147
        $region28: #{tpu_custom_call.1} parent=23 // pred_fallthru
          _
      $region24: #{tpu_custom_call.1} parent=5 // pred_fallthru
        _
      %p161 = scmp.le.s32.totalorder 1, %s16
      %p162 = scmp.lt.s32.totalorder %s16, 3
      %p163 = pnand %p161, %p162
      %p164 = pneg %p163
      // Predicated region
      $region29: #{tpu_custom_call.1} parent=5 // pred_check
        _
      $region30: #{tpu_custom_call.1} parent=5 // pred_check_branch
        %166 = sbr.rel (%p163) target = $region32
      $region31: #{tpu_custom_call.1} parent=5 // pred_region
        %s167 = ssub.s32 %s16, 1
        %s168 = sand.u32 %s29, 1
        %s169 = scalar_lea.sflag [#allocation3], %s168
        %s170 = sand.u32 %s29, 1
        %s171 = smul.addr %s170, 4
        %s172 = scalar_lea.vmem [#allocation2], %s171
        // Predicated region
        $region33: #{tpu_custom_call.1} parent=31 // pred_check
          %p173 = pneg %p42
        $region34: #{tpu_custom_call.1} parent=31 // pred_check_branch
          %175 = sbr.rel (%p173) target = $region36
        $region35: #{tpu_custom_call.1} parent=31 // pred_region
          %176 = dma.done %s169, 64
        $region36: #{tpu_custom_call.1} parent=31 // pred_fallthru
          _
        // Predicated region
        $region37: #{tpu_custom_call.1} parent=31 // pred_check
          %p177 = pneg %p63
        $region38: #{tpu_custom_call.1} parent=31 // pred_check_branch
          %179 = sbr.rel (%p177) target = $region40
        $region39: #{tpu_custom_call.1} parent=31 // pred_region
          %180 = dma.done [#allocation6], 64
        $region40: #{tpu_custom_call.1} parent=31 // pred_fallthru
          _
        %s181 = sand.u32 %s29, 1
        %s182 = scalar_lea.sflag [#allocation3], %s181
        %s183 = sand.u32 %s29, 1
        %s184 = smul.addr %s183, 4
        %s185 = scalar_lea.vmem [#allocation2], %s184
        %p186 = pneg %p42
        %p187 = pneg %p39
        %p188 = pneg %p63
        %p189 = pneg %p60
        %p190 = pneg %p84
        %p191 = pneg %p81
        %p192 = pneg %p110
        %p193 = pneg %p107
        %s194 = sand.u32 %s97, 1
        %s195 = scalar_lea.sflag [#allocation4], %s194
        %s196 = sand.u32 %s97, 1
        %s197 = smul.addr %s196, 4
        %s198 = scalar_lea.vmem [#allocation7], %s197
        %v199 = vld [vmem:[%s172] sm:$0xf]
        %vm200 = vcmask 125952
        %v201 = vsel %vm200, %v199, 0.0
        %202 = vadd.xlane.f32.xlu0 %v201
        %v203 = vpop.xlane.xlu0 %202
        %v204 = vmul.f32 %v203, 0.0625
        %v205 = vld [vmem:[#allocation5] sm:$0xf]
        %v206 = vld [vmem:[%s2] sm:$0x1]
        %v208 = vlaneseq
        %v209 = vand.u32 %v208, 127
        %v210 = vlaneseq
        %v211 = vshrl.u32 %v210, 7
        %v212 = vsub.s32 %v209, %v211
        %v213 = vrot.slane %v204, %v212
        %vm214 = vcmask 31744
        %v215 = vsel %vm214, %v213, 0
        %v218 = vsel %vm214, %v205, 0
        %220 = vmatprep.subr.mxu0 0.0
        %221 = vmatpush1.xpose.msra.mxu0 0.0
        %222 = vmatprep.subr.mxu0 0.0
        %223 = vmatpush1.xpose.msra.mxu0 0.0
        %224 = vmatprep.subr.mxu0 0.0
        %225 = vmatpush1.xpose.msra.mxu0 0.0
        %226 = vmatprep.subr.mxu0 0.0
        %227 = vmatpush1.xpose.msra.mxu0 0.0
        %228 = vmatprep.subr.mxu0 0.0
        %229 = vmatpush1.xpose.msra.mxu0 0.0
        %230 = vmatprep.subr.mxu0 0.0
        %231 = vmatpush1.xpose.msra.mxu0 0.0
        %232 = vmatprep.subr.mxu0 0.0
        %233 = vmatpush1.xpose.msra.mxu0 0.0
        %234 = vmatprep.subr.mxu0 0.0
        %235 = vmatpush1.xpose.msra.mxu0 0.0
        %236 = vmatprep.subr.mxu0 0.0
        %237 = vmatpush1.xpose.msra.mxu0 0.0
        %238 = vmatprep.subr.mxu0 0.0
        %239 = vmatpush1.xpose.msra.mxu0 0.0
        %240 = vmatprep.subr.mxu0 0.0
        %241 = vmatpush1.xpose.msra.mxu0 0.0
        %242 = vmatprep.subr.mxu0 0.0
        %243 = vmatpush1.xpose.msra.mxu0 0.0
        %244 = vmatprep.subr.mxu0 0.0
        %245 = vmatpush1.xpose.msra.mxu0 0.0
        %246 = vmatprep.subr.mxu0 0.0
        %247 = vmatpush1.xpose.msra.mxu0 0.0
        %248 = vmatprep.subr.mxu0 0.0
        %249 = vmatpush1.xpose.msra.mxu0 0.0
        %250 = vmatprep.subr.mxu0 0.0
        %251 = vmatpush1.xpose.msra.mxu0 %v218
        %252 = vmatprep.subr.mxu0 0.0
        %253 = vmatpush2.xpose.msra.mxu0 0.0
        %254 = vmatprep.subr.mxu0 0.0
        %255 = vmatpush2.xpose.msra.mxu0 0.0
        %256 = vmatprep.subr.mxu0 0.0
        %257 = vmatpush2.xpose.msra.mxu0 0.0
        %258 = vmatprep.subr.mxu0 0.0
        %259 = vmatpush2.xpose.msra.mxu0 0.0
        %260 = vmatprep.subr.mxu0 0.0
        %261 = vmatpush2.xpose.msra.mxu0 0.0
        %262 = vmatprep.subr.mxu0 0.0
        %263 = vmatpush2.xpose.msra.mxu0 0.0
        %264 = vmatprep.subr.mxu0 0.0
        %265 = vmatpush2.xpose.msra.mxu0 0.0
        %266 = vmatprep.subr.mxu0 0.0
        %267 = vmatpush2.xpose.msra.mxu0 0.0
        %268 = vmatprep.subr.mxu0 0.0
        %269 = vmatpush2.xpose.msra.mxu0 0.0
        %270 = vmatprep.subr.mxu0 0.0
        %271 = vmatpush2.xpose.msra.mxu0 0.0
        %272 = vmatprep.subr.mxu0 0.0
        %273 = vmatpush2.xpose.msra.mxu0 0.0
        %274 = vmatprep.subr.mxu0 0.0
        %275 = vmatpush2.xpose.msra.mxu0 0.0
        %276 = vmatprep.subr.mxu0 0.0
        %277 = vmatpush2.xpose.msra.mxu0 0.0
        %278 = vmatprep.subr.mxu0 0.0
        %279 = vmatpush2.xpose.msra.mxu0 0.0
        %280 = vmatprep.subr.mxu0 0.0
        %281 = vmatpush2.xpose.msra.mxu0 0.0
        %282 = vmatprep.subr.mxu0 0.0
        %283 = vmatpush2.xpose.msra.mxu0 0.0
        %284 = vmatprep.mubr.f32.mxu0 0.0
        %285 = vmatmul.mubr.f32.gmra.mxu0 %v215
        %v286 = vpop.f32.mrf.mxu0
        %v287 = vadd.f32 %v206, %v286
        %v288 = vpop.f32.mrf.mxu0
        %289 = vdwg.mxu0
        %v290 = vxor.u32 %v287, 2147483648
        %v291 = vmul.f32 %v290, 1.442695
        %v292 = vpow.pop %v291
        %v293 = vadd.f32 %v292, 1.0
        %v294 = vrcp.pop %v293
        %v295 = vmul.f32 1.0, %v294
        %v296 = vlaneseq
        %v297 = vshrl.u32 %v296, 7
        %v298 = vsub.s32 0, %v297
        %v299 = vrot.slane %v295, %v298
        %301 = vbcast.lane.b32.xlu0 %v299, 256
        %v302 = vpop.permute.xlu0 %301
        %v303 = vadd.f32 %v199, 1.0
        %v304 = vmul.f32 %v303, %v302
        %305 = vst.msk [vmem:[%s198] sm:$0xf] %vm200, %v304
        %s306 = sand.u32 %s97, 1
        %s307 = scalar_lea.sflag [#allocation4], %s306
        %s308 = sand.u32 %s97, 1
        %s309 = smul.addr %s308, 4
        %s310 = scalar_lea.vmem [#allocation7], %s309
        // Predicated region
        $region41: #{tpu_custom_call.1} parent=31 // pred_check
          %p311 = pneg %p107
        $region42: #{tpu_custom_call.1} parent=31 // pred_check_branch
          %313 = sbr.rel (%p311) target = $region44
        $region43: #{tpu_custom_call.1} parent=31 // pred_region
          %s315 = ssub.s32 64, 64
          %316 = vsyncadd %s307, %s315
          %s317 = smul.addr %s21, 64
          %s318 = scalar_lea.hbm %s3, %s317
          %s320 = sshll.u32 %s310, 4
          %s321 = int_to_ptr.vmem [resolvable:$true] %s320
          %323 = dma.vmem_to_hbm [thread:$0]  %s321, 64, %s318, %s307
        $region44: #{tpu_custom_call.1} parent=31 // pred_fallthru
          _
      $region32: #{tpu_custom_call.1} parent=5 // pred_fallthru
        _
      %p324 = scmp.le.s32.totalorder 2, %s16
      // Predicated region
      $region45: #{tpu_custom_call.1} parent=5 // pred_check
        %p325 = pneg %p324
      $region46: #{tpu_custom_call.1} parent=5 // pred_check_branch
        %327 = sbr.rel (%p325) target = $region48
      $region47: #{tpu_custom_call.1} parent=5 // pred_region
        %s328 = ssub.s32 %s16, 2
        // Predicated region
        $region49: #{tpu_custom_call.1} parent=47 // pred_check
          %p329 = pneg %p113
        $region50: #{tpu_custom_call.1} parent=47 // pred_check_branch
          %331 = sbr.rel (%p329) target = $region52
        $region51: #{tpu_custom_call.1} parent=47 // pred_region
          %s332 = sand.u32 %s98, 1
          %s333 = scalar_lea.sflag [#allocation4], %s332
          %s334 = sand.u32 %s98, 1
          %s335 = smul.addr %s334, 4
          %s336 = scalar_lea.vmem [#allocation7], %s335
          %337 = dma.done %s333, 64
        $region52: #{tpu_custom_call.1} parent=47 // pred_fallthru
          _
      $region48: #{tpu_custom_call.1} parent=5 // pred_fallthru
        _
    $region6: #{tpu_custom_call.1} parent=1 // loop_footer
      %s20 = sadd.s32 1, %s16
    $region7: #{tpu_custom_call.1} parent=1 // loop_footer_branch
      %15 = sbr.rel target = $region3
    $region8: #{tpu_custom_call.1} parent=1 // loop_exit
      _
    %338 = vsyncpa [#allocation3], 1
    %s339 = scalar_lea.sflag [#allocation3], 1
    %340 = vsyncpa %s339, 1
    %341 = vsyncpa [#allocation6], 1
    %342 = vsyncpa [#allocation4], 1
    %s343 = scalar_lea.sflag [#allocation4], 1
    %344 = vsyncpa %s343, 1

</llo_original>
